<compile_context>
chip_gen: v7x
topology: tpu7x:2x2x1
jax: 0.10.0
libtpu: 0.0.40
codegen_flags: <defaults>
</compile_context>

<pallas_src>
import jax
import jax.numpy as jnp
from jax.experimental import pallas as pl
from jax.experimental.pallas import tpu as pltpu


# --------------------------------------------------------------------------- #
# Generation-aware VMEM budgeting
# --------------------------------------------------------------------------- #
def _vmem_capacity():
    try:
        return int(pltpu.get_tpu_info().vmem_capacity_bytes)
    except Exception:
        return 64 * 1024 * 1024  # conservative (v7x per-TC capacity)


def _vmem_budget_and_limit():
    cap = _vmem_capacity()
    limit = min(int(cap * 3 // 4), 100 * 1024 * 1024)   # scoped VMEM limit
    budget = int(limit * 4 // 5)                        # sizing headroom
    return budget, limit


def _row_tile(M, H, budget):
    """Row tile for the projection GEMM, budgeting weight + x + out + f32 acc."""
    D = 4 * H
    fixed = 2 * (H * D * 2) + 2 * (D * 4)           # bf16 weight + f32 bias, x2 buffers
    per_row = 2 * (H * 2) + 2 * (D * 2) + D * 4     # bf16 x, bf16 out (x2 bufs), f32 acc
    tm = max(16, max(budget - fixed, 0) // per_row)
    tm = max(16, min(1024, (tm // 16) * 16))
    return M if tm >= M else tm


def _q_tile(L, H, budget):
    """Query-row tile for the contact kernel.  Must divide L (or equal L)."""
    if L <= 256:
        return L
    D = 4 * H
    fixed = 2 * 4 * L * D * 2                       # resident (4,1,L,D) bf16, x2 buffers
    per_row = (2 * 2 + 4) * L * 4                   # pos/neg out blocks (x2) + f32 partials
    cap = max(8, max(budget - fixed, per_row * 8) // per_row)
    for t in (512, 256, 128, 64, 32, 16, 8):
        if t <= cap and L % t == 0:
            return t
    return L  # no clean divisor: single full-row tile (always valid)


# --------------------------------------------------------------------------- #
# Kernel 1: fused K/Q (+neg) projections, column-tiled over the 4 projections
# --------------------------------------------------------------------------- #
def _proj_kernel(x_ref, w_ref, b_ref, out_ref):
    # x: (TM, H) bf16   w: (1, H, D) bf16   b: (1, 1, D) f32   out: (1, TM, D) bf16
    acc = jnp.dot(x_ref[...], w_ref[0], preferred_element_type=jnp.float32)
    out_ref[0] = (acc + b_ref[0]).astype(out_ref.dtype)


# --------------------------------------------------------------------------- #
# Kernel 2: symmetric contact maps; row tile is sliced from the resident block
# --------------------------------------------------------------------------- #
def _contact_kernel(s_ref, pos_ref, neg_ref):
    # s_ref: (4, 1, L, D) bf16, channels [k, q, k_neg, q_neg]; resident over i.
    # pos_ref / neg_ref: (1, TQ, L) f32.
    tq = pos_ref.shape[1]
    r0 = pl.multiple_of(pl.program_id(1) * tq, tq)

    sk_f, sq_f = s_ref[0, 0], s_ref[1, 0]
    skn_f, sqn_f = s_ref[2, 0], s_ref[3, 0]
    sk_t = s_ref[0, 0, pl.ds(r0, tq), :]
    sq_t = s_ref[1, 0, pl.ds(r0, tq), :]
    skn_t = s_ref[2, 0, pl.ds(r0, tq), :]
    sqn_t = s_ref[3, 0, pl.ds(r0, tq), :]

    c_row = jnp.einsum('qd,kd->qk', sk_t, sq_f, preferred_element_type=jnp.float32)
    c_col = jnp.einsum('qd,kd->qk', sq_t, sk_f, preferred_element_type=jnp.float32)
    pos_ref[0] = ((c_row + c_col) * 0.5).astype(pos_ref.dtype)

    n_row = jnp.einsum('qd,kd->qk', skn_t, sqn_f, preferred_element_type=jnp.float32)
    n_col = jnp.einsum('qd,kd->qk', sqn_t, skn_f, preferred_element_type=jnp.float32)
    neg_ref[0] = ((n_row + n_col) * 0.5).astype(neg_ref.dtype)


# --------------------------------------------------------------------------- #
# Parameter packing (hoisted out of the per-call path; done once at init)
# --------------------------------------------------------------------------- #
def pack_params(wk, bk, wq, bq, wkn, bkn, wqn, bqn):
    """PyTorch convention: w* is (4H, H), b* is (4H,).  Returns bf16 (4, H, D)
    stacked weights and f32 (4, 1, D) biases (channel order: k, q, kn, qn)."""
    w_all = jnp.stack([wk.T, wq.T, wkn.T, wqn.T], axis=0).astype(jnp.bfloat16)
    b_all = jnp.stack([bk, bq, bkn, bqn], axis=0)[:, None, :].astype(jnp.float32)
    return w_all, b_all


# --------------------------------------------------------------------------- #
# Forward
# --------------------------------------------------------------------------- #
@jax.jit
def pairwise_contact_head_forward(x, w_all, b_all):
    """x: (B, L, H) float32; w_all: (4, H, 4H) bf16; b_all: (4, 1, 4H) f32.
    Returns (B, L, L, 2) float32 — [..., 0] = pos_pred, [..., 1] = neg_pred."""
    B, L, H = x.shape
    D = 4 * H
    M = B * L
    budget, vmem_limit = _vmem_budget_and_limit()

    x2 = x.reshape(M, H).astype(jnp.bfloat16)

    # ---------------- kernel 1: projections -> stacked (4, M, D) bf16 ----------------
    TM = _row_tile(M, H, budget)
    s_all = pl.pallas_call(
        _proj_kernel,
        out_shape=jax.ShapeDtypeStruct((4, M, D), jnp.bfloat16),
        grid_spec=pltpu.PrefetchScalarGridSpec(
            num_scalar_prefetch=0,
            grid=(4, pl.cdiv(M, TM)),          # projection axis outer -> weight resident
            in_specs=[
                pl.BlockSpec((TM, H), lambda j, i: (i, 0)),
                pl.BlockSpec((1, H, D), lambda j, i: (j, 0, 0)),
                pl.BlockSpec((1, 1, D), lambda j, i: (j, 0, 0)),
            ],
            out_specs=pl.BlockSpec((1, TM, D), lambda j, i: (j, i, 0)),
        ),
        compiler_params=pltpu.CompilerParams(
            dimension_semantics=("arbitrary", "parallel"),
            vmem_limit_bytes=vmem_limit),
    )(x2, w_all, b_all)

    s_all = s_all.reshape(4, B, L, D)

    # ---------------- kernel 2: symmetric contact maps ----------------
    TQ = _q_tile(L, H, budget)
    cmap = jax.ShapeDtypeStruct((B, L, L), jnp.float32)
    pos, neg = pl.pallas_call(
        _contact_kernel,
        out_shape=(cmap, cmap),
        grid_spec=pltpu.PrefetchScalarGridSpec(
            num_scalar_prefetch=0,
            grid=(B, pl.cdiv(L, TQ)),
            in_specs=[pl.BlockSpec((4, 1, L, D), lambda b, i: (0, b, 0, 0))],
            out_specs=[pl.BlockSpec((1, TQ, L), lambda b, i: (b, i, 0))] * 2,
        ),
        compiler_params=pltpu.CompilerParams(
            dimension_semantics=("parallel", "parallel"),
            vmem_limit_bytes=vmem_limit),
    )(s_all)

    # TODO(synk): the final channel stack is one extra XLA pass over 2*B*L^2
    # values; downstream consumers could take (pos, neg) directly, but the
    # module contract is a single (B, L, L, 2) tensor.
    return jnp.stack([pos, neg], axis=-1)


# --------------------------------------------------------------------------- #
# References for validation
# --------------------------------------------------------------------------- #
def _reference_bf16(x, w_all, b_all):
    """Mirrors the kernel datapath (bf16 operands, f32 accumulation)."""
    xb = x.astype(jnp.bfloat16)
    s = jnp.einsum('blh,chd->cbld', xb, w_all,
                   preferred_element_type=jnp.float32) + b_all[:, None]
    s = s.astype(jnp.bfloat16)
    sk, sq, skn, sqn = s[0], s[1], s[2], s[3]
    c = jnp.einsum('bld,bmd->blm', sk, sq, preferred_element_type=jnp.float32)
    cn = jnp.einsum('bld,bmd->blm', skn, sqn, preferred_element_type=jnp.float32)
    pos = (c + jnp.swapaxes(c, 1, 2)) * 0.5
    neg = (cn + jnp.swapaxes(cn, 1, 2)) * 0.5
    return jnp.stack([pos, neg], axis=-1)


def _reference_f32(x, wk, bk, wq, bq, wkn, bkn, wqn, bqn):
    hp = jax.lax.Precision.HIGHEST
    def proj(w, b):
        return jnp.einsum('blh,dh->bld', x, w, precision=hp) + b
    sk, sq = proj(wk, bk), proj(wq, bq)
    skn, sqn = proj(wkn, bkn), proj(wqn, bqn)
    c = jnp.einsum('bld,bmd->blm', sk, sq, precision=hp)
    cn = jnp.einsum('bld,bmd->blm', skn, sqn, precision=hp)
    pos = (c + jnp.swapaxes(c, 1, 2)) * 0.5
    neg = (cn + jnp.swapaxes(cn, 1, 2)) * 0.5
    return jnp.stack([pos, neg], axis=-1)


if __name__ == "__main__":
    key = jax.random.PRNGKey(0)
    ks = jax.random.split(key, 9)

    # Small shapes consistent with the module: batch=2, seq=8, hidden=32.
    B, L, H = 2, 8, 32
    x = jax.random.normal(ks[0], (B, L, H), dtype=jnp.float32)

    # Deterministic nn.Linear(H, 4H) init: U(-1/sqrt(fan_in), 1/sqrt(fan_in)).
    bound = 1.0 / (H ** 0.5)
    def lin(kw, kb):
        w = jax.random.uniform(kw, (4 * H, H), jnp.float32, -bound, bound)
        b = jax.random.uniform(kb, (4 * H,), jnp.float32, -bound, bound)
        return w, b
    wk, bk = lin(ks[1], ks[2])
    wq, bq = lin(ks[3], ks[4])
    wkn, bkn = lin(ks[5], ks[6])
    wqn, bqn = lin(ks[7], ks[8])

    # Weight packing hoisted out of the forward path (done once at "init").
    w_all, b_all = pack_params(wk, bk, wq, bq, wkn, bkn, wqn, bqn)

    out = pairwise_contact_head_forward(x, w_all, b_all)
    out = jax.block_until_ready(out)
    assert out.shape == (B, L, L, 2), out.shape

    # Tight check against a reference that mirrors the bf16 datapath exactly.
    ref_b = _reference_bf16(x, w_all, b_all)
    err_b = float(jnp.max(jnp.abs(out - ref_b)))
    assert jnp.allclose(out, ref_b, atol=1e-2, rtol=1e-2), err_b

    # Loose check against the f32 module math (bf16-class matmul precision).
    ref_f = _reference_f32(x, wk, bk, wq, bq, wkn, bkn, wqn, bqn)
    err_f = float(jnp.max(jnp.abs(out - ref_f)))
    assert jnp.allclose(out, ref_f, atol=0.5, rtol=0.05), err_f

    # TODO(synk): the reference forward's unused `sequence_lengths`/`targets`
    # (loss) arguments have no effect on the returned outputs and are omitted.
    print("KERNEL_OK")
</pallas_src>

<mosaic_0001>
module attributes {stable_mosaic.version = 11 : i64} {
  func.func @_contact_kernel(%arg0: i32, %arg1: i32, %arg2: memref<4x1x8x128xbf16, #tpu.memory_space<vmem>>, %arg3: memref<1x8x8xf32, #tpu.memory_space<vmem>>, %arg4: memref<1x8x8xf32, #tpu.memory_space<vmem>>) attributes {dimension_semantics = [#tpu.dimension_semantics<parallel>, #tpu.dimension_semantics<parallel>], iteration_bounds = array<i64: 2, 1>, scalar_prefetch = 0 : i64, scratch_operands = 0 : i64, tpu.core_type = #tpu.core_type<tc>, window_params = [{transform_indices = @transform_0, window_bounds = array<i64: 4, 1, 8, 128>}, {transform_indices = @transform_1, window_bounds = array<i64: 1, 8, 8>}, {transform_indices = @transform_2, window_bounds = array<i64: 1, 8, 8>}]} {
    %c8_i32 = arith.constant 8 : i32
    %0 = arith.muli %arg1, %c8_i32 : i32
    %1 = tpu.assume_multiple %0, 8 : i32
    %c0 = arith.constant 0 : index
    %c0_0 = arith.constant 0 : index
    %c0_1 = arith.constant 0 : index
    %c0_2 = arith.constant 0 : index
    %2 = vector.load %arg2[%c0, %c0_0, %c0_1, %c0_2] : memref<4x1x8x128xbf16, #tpu.memory_space<vmem>>, vector<1x1x8x128xbf16>
    %3 = vector.shape_cast %2 : vector<1x1x8x128xbf16> to vector<8x128xbf16>
    %c1 = arith.constant 1 : index
    %c0_3 = arith.constant 0 : index
    %c0_4 = arith.constant 0 : index
    %c0_5 = arith.constant 0 : index
    %4 = vector.load %arg2[%c1, %c0_3, %c0_4, %c0_5] : memref<4x1x8x128xbf16, #tpu.memory_space<vmem>>, vector<1x1x8x128xbf16>
    %5 = vector.shape_cast %4 : vector<1x1x8x128xbf16> to vector<8x128xbf16>
    %c2 = arith.constant 2 : index
    %c0_6 = arith.constant 0 : index
    %c0_7 = arith.constant 0 : index
    %c0_8 = arith.constant 0 : index
    %6 = vector.load %arg2[%c2, %c0_6, %c0_7, %c0_8] : memref<4x1x8x128xbf16, #tpu.memory_space<vmem>>, vector<1x1x8x128xbf16>
    %7 = vector.shape_cast %6 : vector<1x1x8x128xbf16> to vector<8x128xbf16>
    %c3 = arith.constant 3 : index
    %c0_9 = arith.constant 0 : index
    %c0_10 = arith.constant 0 : index
    %c0_11 = arith.constant 0 : index
    %8 = vector.load %arg2[%c3, %c0_9, %c0_10, %c0_11] : memref<4x1x8x128xbf16, #tpu.memory_space<vmem>>, vector<1x1x8x128xbf16>
    %9 = vector.shape_cast %8 : vector<1x1x8x128xbf16> to vector<8x128xbf16>
    %c0_12 = arith.constant 0 : index
    %c0_13 = arith.constant 0 : index
    %10 = arith.index_cast %1 : i32 to index
    %c0_14 = arith.constant 0 : index
    %11 = vector.load %arg2[%c0_12, %c0_13, %10, %c0_14] : memref<4x1x8x128xbf16, #tpu.memory_space<vmem>>, vector<1x1x8x128xbf16>
    %12 = vector.shape_cast %11 : vector<1x1x8x128xbf16> to vector<8x128xbf16>
    %c1_15 = arith.constant 1 : index
    %c0_16 = arith.constant 0 : index
    %13 = arith.index_cast %1 : i32 to index
    %c0_17 = arith.constant 0 : index
    %14 = vector.load %arg2[%c1_15, %c0_16, %13, %c0_17] : memref<4x1x8x128xbf16, #tpu.memory_space<vmem>>, vector<1x1x8x128xbf16>
    %15 = vector.shape_cast %14 : vector<1x1x8x128xbf16> to vector<8x128xbf16>
    %c2_18 = arith.constant 2 : index
    %c0_19 = arith.constant 0 : index
    %16 = arith.index_cast %1 : i32 to index
    %c0_20 = arith.constant 0 : index
    %17 = vector.load %arg2[%c2_18, %c0_19, %16, %c0_20] : memref<4x1x8x128xbf16, #tpu.memory_space<vmem>>, vector<1x1x8x128xbf16>
    %18 = vector.shape_cast %17 : vector<1x1x8x128xbf16> to vector<8x128xbf16>
    %c3_21 = arith.constant 3 : index
    %c0_22 = arith.constant 0 : index
    %19 = arith.index_cast %1 : i32 to index
    %c0_23 = arith.constant 0 : index
    %20 = vector.load %arg2[%c3_21, %c0_22, %19, %c0_23] : memref<4x1x8x128xbf16, #tpu.memory_space<vmem>>, vector<1x1x8x128xbf16>
    %21 = vector.shape_cast %20 : vector<1x1x8x128xbf16> to vector<8x128xbf16>
    "tpu.trace_start"() <{level = 10 : i32, message = "qd,kd->qk"}> : () -> ()
    %cst = arith.constant dense<0.000000e+00> : vector<8x8xf32>
    %22 = tpu.matmul %12, %5, %cst {dimension_numbers = #tpu.dot_dimension_numbers<[1], [1], [0], [0], [0, 0, 1, 0], [], []>} : vector<8x128xbf16>, vector<8x128xbf16>, vector<8x8xf32> -> vector<8x8xf32>
    %cst_24 = arith.constant dense<0.000000e+00> : vector<8x8xf32>
    %23 = tpu.matmul %15, %3, %cst_24 {dimension_numbers = #tpu.dot_dimension_numbers<[1], [1], [0], [0], [0, 0, 1, 0], [], []>} : vector<8x128xbf16>, vector<8x128xbf16>, vector<8x8xf32> -> vector<8x8xf32>
    "tpu.trace_stop"() : () -> ()
    %24 = arith.addf %22, %23 : vector<8x8xf32>
    %cst_25 = arith.constant 5.000000e-01 : f32
    %25 = vector.broadcast %cst_25 : f32 to vector<8x8xf32>
    %26 = arith.mulf %24, %25 : vector<8x8xf32>
    %c0_26 = arith.constant 0 : index
    %c0_27 = arith.constant 0 : index
    %c0_28 = arith.constant 0 : index
    %27 = vector.load %arg3[%c0_26, %c0_27, %c0_28] : memref<1x8x8xf32, #tpu.memory_space<vmem>>, vector<1x8x8xf32>
    %28 = vector.shape_cast %27 : vector<1x8x8xf32> to vector<8x8xf32>
    %29 = vector.shape_cast %26 : vector<8x8xf32> to vector<1x8x8xf32>
    tpu.vector_store %arg3[%c0_26, %c0_27, %c0_28], %29 {strides = array<i32>} : memref<1x8x8xf32, #tpu.memory_space<vmem>>, vector<1x8x8xf32>,
    "tpu.trace_start"() <{level = 10 : i32, message = "qd,kd->qk"}> : () -> ()
    %cst_29 = arith.constant dense<0.000000e+00> : vector<8x8xf32>
    %30 = tpu.matmul %18, %9, %cst_29 {dimension_numbers = #tpu.dot_dimension_numbers<[1], [1], [0], [0], [0, 0, 1, 0], [], []>} : vector<8x128xbf16>, vector<8x128xbf16>, vector<8x8xf32> -> vector<8x8xf32>
    %cst_30 = arith.constant dense<0.000000e+00> : vector<8x8xf32>
    %31 = tpu.matmul %21, %7, %cst_30 {dimension_numbers = #tpu.dot_dimension_numbers<[1], [1], [0], [0], [0, 0, 1, 0], [], []>} : vector<8x128xbf16>, vector<8x128xbf16>, vector<8x8xf32> -> vector<8x8xf32>
    "tpu.trace_stop"() : () -> ()
    %32 = arith.addf %30, %31 : vector<8x8xf32>
    %cst_31 = arith.constant 5.000000e-01 : f32
    %33 = vector.broadcast %cst_31 : f32 to vector<8x8xf32>
    %34 = arith.mulf %32, %33 : vector<8x8xf32>
    %c0_32 = arith.constant 0 : index
    %c0_33 = arith.constant 0 : index
    %c0_34 = arith.constant 0 : index
    %35 = vector.load %arg4[%c0_32, %c0_33, %c0_34] : memref<1x8x8xf32, #tpu.memory_space<vmem>>, vector<1x8x8xf32>
    %36 = vector.shape_cast %35 : vector<1x8x8xf32> to vector<8x8xf32>
    %37 = vector.shape_cast %34 : vector<8x8xf32> to vector<1x8x8xf32>
    tpu.vector_store %arg4[%c0_32, %c0_33, %c0_34], %37 {strides = array<i32>} : memref<1x8x8xf32, #tpu.memory_space<vmem>>, vector<1x8x8xf32>,
    return
  }
  func.func @transform_0(%arg0: i32, %arg1: i32) -> (i32, i32, i32, i32) {
    %c0_i32 = arith.constant 0 : i32
    %c0_i32_0 = arith.constant 0 : i32
    %c0_i32_1 = arith.constant 0 : i32
    %c0_i32_2 = arith.constant 0 : i32
    return %c0_i32, %arg0, %c0_i32_0, %c0_i32_1 : i32, i32, i32, i32
  }
  func.func @transform_1(%arg0: i32, %arg1: i32) -> (i32, i32, i32) {
    %c0_i32 = arith.constant 0 : i32
    %c0_i32_0 = arith.constant 0 : i32
    return %arg0, %arg1, %c0_i32 : i32, i32, i32
  }
  func.func @transform_2(%arg0: i32, %arg1: i32) -> (i32, i32, i32) {
    %c0_i32 = arith.constant 0 : i32
    %c0_i32_0 = arith.constant 0 : i32
    return %arg0, %arg1, %c0_i32 : i32, i32, i32
  }
}

module attributes {stable_mosaic.version = 11 : i64} {
  func.func @_proj_kernel(%arg0: i32, %arg1: i32, %arg2: memref<16x32xbf16, #tpu.memory_space<vmem>>, %arg3: memref<1x32x128xbf16, #tpu.memory_space<vmem>>, %arg4: memref<1x1x128xf32, #tpu.memory_space<vmem>>, %arg5: memref<1x16x128xbf16, #tpu.memory_space<vmem>>) attributes {dimension_semantics = [#tpu.dimension_semantics<arbitrary>, #tpu.dimension_semantics<parallel>], iteration_bounds = array<i64: 4, 1>, scalar_prefetch = 0 : i64, scratch_operands = 0 : i64, tpu.core_type = #tpu.core_type<tc>, window_params = [{transform_indices = @transform_0, window_bounds = array<i64: 16, 32>}, {transform_indices = @transform_1, window_bounds = array<i64: 1, 32, 128>}, {transform_indices = @transform_2, window_bounds = array<i64: 1, 1, 128>}, {transform_indices = @transform_3, window_bounds = array<i64: 1, 16, 128>}]} {
    %c0 = arith.constant 0 : index
    %c0_0 = arith.constant 0 : index
    %0 = vector.load %arg2[%c0, %c0_0] : memref<16x32xbf16, #tpu.memory_space<vmem>>, vector<16x32xbf16>
    %c0_1 = arith.constant 0 : index
    %c0_2 = arith.constant 0 : index
    %c0_3 = arith.constant 0 : index
    %1 = vector.load %arg3[%c0_1, %c0_2, %c0_3] : memref<1x32x128xbf16, #tpu.memory_space<vmem>>, vector<1x32x128xbf16>
    %2 = vector.shape_cast %1 : vector<1x32x128xbf16> to vector<32x128xbf16>
    %cst = arith.constant dense<0.000000e+00> : vector<16x128xf32>
    %3 = tpu.matmul %0, %2, %cst {dimension_numbers = #tpu.dot_dimension_numbers<[1], [0], [0], [1], [0, 0, 1, 1], [], []>} : vector<16x32xbf16>, vector<32x128xbf16>, vector<16x128xf32> -> vector<16x128xf32>
    %c0_4 = arith.constant 0 : index
    %c0_5 = arith.constant 0 : index
    %c0_6 = arith.constant 0 : index
    %4 = vector.load %arg4[%c0_4, %c0_5, %c0_6] : memref<1x1x128xf32, #tpu.memory_space<vmem>>, vector<1x1x128xf32>
    %5 = vector.shape_cast %4 : vector<1x1x128xf32> to vector<1x128xf32>
    %6 = vector.broadcast %5 : vector<1x128xf32> to vector<16x128xf32>
    %7 = arith.addf %3, %6 : vector<16x128xf32>
    %8 = arith.truncf %7 : vector<16x128xf32> to vector<16x128xbf16>
    %c0_7 = arith.constant 0 : index
    %c0_8 = arith.constant 0 : index
    %c0_9 = arith.constant 0 : index
    %9 = vector.load %arg5[%c0_7, %c0_8, %c0_9] : memref<1x16x128xbf16, #tpu.memory_space<vmem>>, vector<1x16x128xbf16>
    %10 = vector.shape_cast %9 : vector<1x16x128xbf16> to vector<16x128xbf16>
    %11 = vector.shape_cast %8 : vector<16x128xbf16> to vector<1x16x128xbf16>
    tpu.vector_store %arg5[%c0_7, %c0_8, %c0_9], %11 {strides = array<i32>} : memref<1x16x128xbf16, #tpu.memory_space<vmem>>, vector<1x16x128xbf16>,
    return
  }
  func.func @transform_0(%arg0: i32, %arg1: i32) -> (i32, i32) {
    %c0_i32 = arith.constant 0 : i32
    %c0_i32_0 = arith.constant 0 : i32
    return %arg1, %c0_i32 : i32, i32
  }
  func.func @transform_1(%arg0: i32, %arg1: i32) -> (i32, i32, i32) {
    %c0_i32 = arith.constant 0 : i32
    %c0_i32_0 = arith.constant 0 : i32
    %c0_i32_1 = arith.constant 0 : i32
    return %arg0, %c0_i32, %c0_i32_0 : i32, i32, i32
  }
  func.func @transform_2(%arg0: i32, %arg1: i32) -> (i32, i32, i32) {
    %c0_i32 = arith.constant 0 : i32
    %c0_i32_0 = arith.constant 0 : i32
    %c0_i32_1 = arith.constant 0 : i32
    return %arg0, %c0_i32, %c0_i32_0 : i32, i32, i32
  }
  func.func @transform_3(%arg0: i32, %arg1: i32) -> (i32, i32, i32) {
    %c0_i32 = arith.constant 0 : i32
    %c0_i32_0 = arith.constant 0 : i32
    return %arg0, %arg1, %c0_i32 : i32, i32, i32
  }
}

</mosaic_0001>

<llo_original>
// kernel: pairwise_contact_head_forward.2
$region0: #{pairwise_contact_head_forward.2}
  #allocation0 [shape = 'u32[]', space=smem, size = 0x4, offset = 0x4, fixed_abs, tag = 'smem constant byte address 0x4 - core index']
  #allocation1 [shape = 'u32[144,128]{1,0:T(1,128)}', space=vmem, size = 0x12000, scoped, tag = 'internal scratch']
  %s0 = inlined_call_operand.vmem [shape: bf16[16,32], index: 0, kind: input, shape index: {}]
  %s1 = inlined_call_operand.hbm [shape: bf16[4,32,128], index: 1, kind: input, shape index: {}]
  %s2 = inlined_call_operand.vmem [shape: f32[4,1,128], index: 2, kind: input, shape index: {}]
  %s3 = inlined_call_operand.vmem [shape: bf16[4,16,128], index: 3, kind: output, shape index: {}]
  %s4 = sld [smem:[#allocation0]]
  $region49: #{pairwise_contact_head_forward.2} parent=0
    _
  %s6 = ssub.s32 1, %s4
  %s7 = scalar_select 0, %s6, %s4
  $region1: #{pairwise_contact_head_forward.2} parent=0
    #allocation2 [shape = 'u8[16384]{0}', space=vmem, size = 0x4000, scoped, tag = 'input window, operand 1']
    #allocation3 [shape = 's32[2]{0}', space=sflag, size = 0x8, scoped, tag = 'scoped memory for pairwise_contact_head_forward.2']
    %8 = vsyncpa [#allocation3], 0
    %s9 = scalar_lea.sflag [#allocation3], 1
    %10 = vsyncpa %s9, 0
    loop: start=0, step=1, limit=6
    $region2: #{pairwise_contact_head_forward.2} parent=1 // loop_pre_header
      _
    $region3: #{pairwise_contact_head_forward.2} parent=1 // loop_header
      %s12 = sphi 0, %s16
      %p13 = scmp.ge.s32.totalorder %s12, 6
      %s19 = sphi 0, %s31
      %s20 = sphi 0, %s27
      %s21 = sphi 0, %s19
      %s22 = sphi 0, %s20
      %s23 = sphi 0, %s21
      %s24 = sphi 0, %s22
      %s34 = sphi 0, %s36
      %s37 = sphi 0, %s34
      %s38 = sphi 0, %s37
      %s54 = sphi 0, %s38
      %s60 = sphi 0, %s62
      %s63 = sphi 0, %s60
      %s64 = sphi 0, %s63
      %s80 = sphi 0, %s64
      %s86 = sphi 0, %s88
      %s89 = sphi 0, %s86
      %s90 = sphi 0, %s89
      %s106 = sphi 0, %s90
      %s114 = sphi 0, %s116
      %s117 = sphi 0, %s114
      %s118 = sphi 0, %s117
      %s134 = sphi 0, %s118
    $region4: #{pairwise_contact_head_forward.2} parent=1 // loop_header_branch
      %15 = sbr.rel (%p13) target = $region8
    $region5: #{pairwise_contact_head_forward.2} parent=1 // loop_body
      %s17 = ssub.s32 %s12, 1
      %s18 = ssub.s32 %s12, 2
      %s25 = sadd.s32 1, %s20
      %p26 = scmp.ge.s32.totalorder %s25, 1
      %s27 = scalar_select %p26, 0, %s25
      %s28 = sadd.s32 1, %s19
      %s29 = scalar_select %p26, %s28, %s19
      %p30 = scmp.ge.s32.totalorder %s29, 4
      %s31 = scalar_select %p30, 0, %s29
      %s32 = ssub.s32 %s20, %s27
      %p33 = scmp.eq.s32.totalorder %s32, 0
      %s35 = sadd.s32 %s34, 1
      %s36 = scalar_select %p33, %s34, %s35
      %p39 = pneg %p33
      %p40 = scmp.eq.s32.totalorder %s12, 3
      %p41 = por %p39, %p40
      %p42 = scmp.ne.s32.totalorder %s34, %s37
      %p43 = scmp.eq.s32.totalorder %s12, 0
      %p44 = por %p42, %p43
      %p45 = scmp.ne.s32.totalorder %s34, %s37
      %p46 = scmp.eq.s32.totalorder %s17, 3
      %p47 = por %p45, %p46
      %p48 = scmp.ne.s32.totalorder %s37, %s38
      %p49 = scmp.eq.s32.totalorder %s17, 0
      %p50 = por %p48, %p49
      %p51 = scmp.ne.s32.totalorder %s37, %s38
      %p52 = scmp.eq.s32.totalorder %s18, 3
      %p53 = por %p51, %p52
      %p55 = scmp.ne.s32.totalorder %s38, %s54
      %p56 = scmp.eq.s32.totalorder %s18, 0
      %p57 = por %p55, %p56
      %s58 = ssub.s32 %s19, %s31
      %p59 = scmp.eq.s32.totalorder %s58, 0
      %s61 = sadd.s32 %s60, 1
      %s62 = scalar_select %p59, %s60, %s61
      %p65 = pneg %p59
      %p66 = scmp.eq.s32.totalorder %s12, 3
      %p67 = por %p65, %p66
      %p68 = scmp.ne.s32.totalorder %s60, %s63
      %p69 = scmp.eq.s32.totalorder %s12, 0
      %p70 = por %p68, %p69
      %p71 = scmp.ne.s32.totalorder %s60, %s63
      %p72 = scmp.eq.s32.totalorder %s17, 3
      %p73 = por %p71, %p72
      %p74 = scmp.ne.s32.totalorder %s63, %s64
      %p75 = scmp.eq.s32.totalorder %s17, 0
      %p76 = por %p74, %p75
      %p77 = scmp.ne.s32.totalorder %s63, %s64
      %p78 = scmp.eq.s32.totalorder %s18, 3
      %p79 = por %p77, %p78
      %p81 = scmp.ne.s32.totalorder %s64, %s80
      %p82 = scmp.eq.s32.totalorder %s18, 0
      %p83 = por %p81, %p82
      %s84 = ssub.s32 %s19, %s31
      %p85 = scmp.eq.s32.totalorder %s84, 0
      %s87 = sadd.s32 %s86, 1
      %s88 = scalar_select %p85, %s86, %s87
      %p91 = pneg %p85
      %p92 = scmp.eq.s32.totalorder %s12, 3
      %p93 = por %p91, %p92
      %p94 = scmp.ne.s32.totalorder %s86, %s89
      %p95 = scmp.eq.s32.totalorder %s12, 0
      %p96 = por %p94, %p95
      %p97 = scmp.ne.s32.totalorder %s86, %s89
      %p98 = scmp.eq.s32.totalorder %s17, 3
      %p99 = por %p97, %p98
      %p100 = scmp.ne.s32.totalorder %s89, %s90
      %p101 = scmp.eq.s32.totalorder %s17, 0
      %p102 = por %p100, %p101
      %p103 = scmp.ne.s32.totalorder %s89, %s90
      %p104 = scmp.eq.s32.totalorder %s18, 3
      %p105 = por %p103, %p104
      %p107 = scmp.ne.s32.totalorder %s90, %s106
      %p108 = scmp.eq.s32.totalorder %s18, 0
      %p109 = por %p107, %p108
      %s110 = ssub.s32 %s19, %s31
      %s111 = ssub.s32 %s20, %s27
      %s112 = sor.u32 %s110, %s111
      %p113 = scmp.eq.s32.totalorder %s112, 0
      %s115 = sadd.s32 %s114, 1
      %s116 = scalar_select %p113, %s114, %s115
      %p119 = pneg %p113
      %p120 = scmp.eq.s32.totalorder %s12, 3
      %p121 = por %p119, %p120
      %p122 = scmp.ne.s32.totalorder %s114, %s117
      %p123 = scmp.eq.s32.totalorder %s12, 0
      %p124 = por %p122, %p123
      %p125 = scmp.ne.s32.totalorder %s114, %s117
      %p126 = scmp.eq.s32.totalorder %s17, 3
      %p127 = por %p125, %p126
      %p128 = scmp.ne.s32.totalorder %s117, %s118
      %p129 = scmp.eq.s32.totalorder %s17, 0
      %p130 = por %p128, %p129
      %p131 = scmp.ne.s32.totalorder %s117, %s118
      %p132 = scmp.eq.s32.totalorder %s18, 3
      %p133 = por %p131, %p132
      %p135 = scmp.ne.s32.totalorder %s118, %s134
      %p136 = scmp.eq.s32.totalorder %s18, 0
      %p137 = por %p135, %p136
      %p138 = scmp.le.s32.totalorder 1, %s12
      %p139 = scmp.lt.s32.totalorder %s12, 5
      %p140 = pnand %p138, %p139
      %p141 = pneg %p140
      // Predicated region
      $region9: #{pairwise_contact_head_forward.2} parent=5 // pred_check
        _
      $region10: #{pairwise_contact_head_forward.2} parent=5 // pred_check_branch
        %143 = sbr.rel (%p140) target = $region12
      $region11: #{pairwise_contact_head_forward.2} parent=5 // pred_region
        %s144 = ssub.s32 %s12, 1
        // Predicated region
        $region13: #{pairwise_contact_head_forward.2} parent=11 // pred_check
          %p145 = pneg %p50
        $region14: #{pairwise_contact_head_forward.2} parent=11 // pred_check_branch
          %147 = sbr.rel (%p145) target = $region16
        $region15: #{pairwise_contact_head_forward.2} parent=11 // pred_region
          %s148 = smul.u32 2, %s22
          %p149 = scmp.lt.s32.totalorder %s148, 1
          %s150 = scalar_select %p149, %s148, 1
          %s151 = smul.addr %s150, 4
          %s152 = scalar_lea.vmem %s0, %s151
          %s153 = smul.u32 2, %s22
        $region16: #{pairwise_contact_head_forward.2} parent=11 // pred_fallthru
          _
      $region12: #{pairwise_contact_head_forward.2} parent=5 // pred_fallthru
        _
      %p154 = scmp.lt.s32.totalorder %s12, 4
      // Predicated region
      $region17: #{pairwise_contact_head_forward.2} parent=5 // pred_check
        %p155 = pneg %p154
      $region18: #{pairwise_contact_head_forward.2} parent=5 // pred_check_branch
        %157 = sbr.rel (%p155) target = $region20
      $region19: #{pairwise_contact_head_forward.2} parent=5 // pred_region
        // Predicated region
        $region21: #{pairwise_contact_head_forward.2} parent=19 // pred_check
          %p158 = pneg %p70
        $region22: #{pairwise_contact_head_forward.2} parent=19 // pred_check_branch
          %160 = sbr.rel (%p158) target = $region24
        $region23: #{pairwise_contact_head_forward.2} parent=19 // pred_region
          %s161 = sand.u32 %s60, 1
          %s162 = scalar_lea.sflag [#allocation3], %s161
          %s163 = sand.u32 %s60, 1
          %s164 = smul.addr %s163, 16
          %s165 = scalar_lea.vmem [#allocation2], %s164
          %s167 = ssub.s32 256, 256
          %168 = vsyncadd %s162, %s167
          %s169 = smul.addr %s19, 4
          %s170 = smul.addr %s169, 64
          %s171 = scalar_lea.hbm %s1, %s170
          %s172 = sshll.u32 %s165, 4
          %s173 = int_to_ptr.vmem [resolvable:$true] %s172
          %178 = dma.hbm_to_vmem [thread:$0]  %s171, 256, %s173, %s162, 64, 64, 4
        $region24: #{pairwise_contact_head_forward.2} parent=19 // pred_fallthru
          _
        // Predicated region
        $region25: #{pairwise_contact_head_forward.2} parent=19 // pred_check
          %p179 = pneg %p96
        $region26: #{pairwise_contact_head_forward.2} parent=19 // pred_check_branch
          %181 = sbr.rel (%p179) target = $region28
        $region27: #{pairwise_contact_head_forward.2} parent=19 // pred_region
          %p182 = scmp.lt.s32.totalorder %s19, 3
          %s183 = scalar_select %p182, %s19, 3
          %s184 = scalar_lea.vmem %s2, %s183
        $region28: #{pairwise_contact_head_forward.2} parent=19 // pred_fallthru
          _
      $region20: #{pairwise_contact_head_forward.2} parent=5 // pred_fallthru
        _
      %p185 = scmp.le.s32.totalorder 1, %s12
      %p186 = scmp.lt.s32.totalorder %s12, 5
      %p187 = pnand %p185, %p186
      %p188 = pneg %p187
      // Predicated region
      $region29: #{pairwise_contact_head_forward.2} parent=5 // pred_check
        _
      $region30: #{pairwise_contact_head_forward.2} parent=5 // pred_check_branch
        %190 = sbr.rel (%p187) target = $region32
      $region31: #{pairwise_contact_head_forward.2} parent=5 // pred_region
        %s191 = ssub.s32 %s12, 1
        %s192 = sand.u32 %s63, 1
        %s193 = scalar_lea.sflag [#allocation3], %s192
        %s194 = sand.u32 %s63, 1
        %s195 = smul.addr %s194, 16
        %s196 = scalar_lea.vmem [#allocation2], %s195
        // Predicated region
        $region33: #{pairwise_contact_head_forward.2} parent=31 // pred_check
          %p197 = pneg %p76
        $region34: #{pairwise_contact_head_forward.2} parent=31 // pred_check_branch
          %199 = sbr.rel (%p197) target = $region36
        $region35: #{pairwise_contact_head_forward.2} parent=31 // pred_region
          %200 = dma.done %s193, 256
        $region36: #{pairwise_contact_head_forward.2} parent=31 // pred_fallthru
          _
        %s201 = smul.u32 2, %s22
        %p202 = scmp.lt.s32.totalorder %s201, 1
        %s203 = scalar_select %p202, %s201, 1
        %s204 = smul.addr %s203, 4
        %s205 = scalar_lea.vmem %s0, %s204
        %p206 = pneg %p50
        %p207 = pneg %p47
        %s208 = sand.u32 %s63, 1
        %s209 = scalar_lea.sflag [#allocation3], %s208
        %s210 = sand.u32 %s63, 1
        %s211 = smul.addr %s210, 16
        %s212 = scalar_lea.vmem [#allocation2], %s211
        %p213 = pneg %p76
        %p214 = pneg %p73
        %p215 = scmp.lt.s32.totalorder %s21, 3
        %s216 = scalar_select %p215, %s21, 3
        %s217 = scalar_lea.vmem %s2, %s216
        %p218 = pneg %p102
        %p219 = pneg %p99
        %p220 = pneg %p130
        %p221 = pneg %p127
        %s222 = smul.u32 2, %s22
        %p223 = scmp.lt.s32.totalorder %s21, 3
        %s224 = scalar_select %p223, %s21, 3
        %p225 = scmp.lt.s32.totalorder %s222, 1
        %s226 = scalar_select %p225, %s222, 1
        %s227 = smul.addr %s224, 2
        %s228 = sadd.s32 %s226, %s227
        %s229 = smul.addr %s228, 4
        %s230 = scalar_lea.vmem %s3, %s229
        %s231 = smul.u32 2, %s22
        %p232 = scmp.lt.s32.totalorder %s231, 1
        %s233 = scalar_select %p232, %s231, 1
        %s234 = smul.addr %s233, 4
        %s235 = scalar_lea.vmem %s0, %s234
        %s236 = smul.u32 2, %s22
        %p237 = scmp.lt.s32.totalorder %s21, 3
        %s238 = scalar_select %p237, %s21, 3
        %s239 = scalar_lea.vmem %s2, %s238
        %s240 = smul.u32 2, %s22
        %p241 = scmp.lt.s32.totalorder %s21, 3
        %s242 = scalar_select %p241, %s21, 3
        %p243 = scmp.lt.s32.totalorder %s240, 1
        %s244 = scalar_select %p243, %s240, 1
        %s245 = smul.addr %s242, 2
        %s246 = sadd.s32 %s244, %s245
        %s247 = smul.addr %s246, 4
        %s248 = scalar_lea.vmem %s3, %s247
        %s249 = smul.u32 2, %s22
        %v251 = vld [vmem:[%s235] sm:$0xf]
        %v252 = vld [vmem:[%s235 + $0x4] sm:$0xf]
        %v253 = vld [vmem:[%s196] sm:$0xf]
        %v254 = vld [vmem:[%s196 + $0x4] sm:$0xf]
        %v255 = vld [vmem:[%s196 + $0x8] sm:$0xf]
        %v256 = vld [vmem:[%s196 + $0xc] sm:$0xf]
        %v257 = vld [vmem:[%s239] sm:$0x1]
        %v259 = vlaneseq
        %v260 = vshrl.u32 %v259, 7
        %v261 = vsub.s32 0, %v260
        %v262 = vrot.slane %v257, %v261
        %v266 = vunpack.c.l.b16 %v251
        %v267 = vunpack.c.l.b16 %v252
        %v268 = vpack.c.b16 %v267, %v266
        %v273 = vunpack.c.l.b16 %v253
        %v274 = vunpack.c.l.b16 %v254
        %v275 = vunpack.c.l.b16 %v255
        %v276 = vunpack.c.l.b16 %v256
        %v277 = vpack.c.b16 %v274, %v273
        %v278 = vpack.c.b16 %v276, %v275
        %vm281 = vcmask 261120
        %v283 = vsel %vm281, %v268, 0
        %285 = vmatprep.subr.bf16.mxu0 0
        %286 = vmatpush1.bf16.msra.mxu0 %v277
        %287 = vmatprep.subr.bf16.mxu0 0
        %288 = vmatpush1.bf16.msra.mxu0 %v278
        %289 = vmatprep.subr.bf16.mxu0 0
        %290 = vmatpush1.bf16.msra.mxu0 0
        %291 = vmatprep.subr.bf16.mxu0 0
        %292 = vmatpush1.bf16.msra.mxu0 0
        %293 = vmatprep.subr.bf16.mxu0 0
        %294 = vmatpush1.bf16.msra.mxu0 0
        %295 = vmatprep.subr.bf16.mxu0 0
        %296 = vmatpush1.bf16.msra.mxu0 0
        %297 = vmatprep.subr.bf16.mxu0 0
        %298 = vmatpush1.bf16.msra.mxu0 0
        %299 = vmatprep.subr.bf16.mxu0 0
        %300 = vmatpush1.bf16.msra.mxu0 0
        %301 = vmatprep.subr.bf16.mxu0 0
        %302 = vmatpush1.bf16.msra.mxu0 0
        %303 = vmatprep.subr.bf16.mxu0 0
        %304 = vmatpush1.bf16.msra.mxu0 0
        %305 = vmatprep.subr.bf16.mxu0 0
        %306 = vmatpush1.bf16.msra.mxu0 0
        %307 = vmatprep.subr.bf16.mxu0 0
        %308 = vmatpush1.bf16.msra.mxu0 0
        %309 = vmatprep.subr.bf16.mxu0 0
        %310 = vmatpush1.bf16.msra.mxu0 0
        %311 = vmatprep.subr.bf16.mxu0 0
        %312 = vmatpush1.bf16.msra.mxu0 0
        %313 = vmatprep.subr.bf16.mxu0 0
        %314 = vmatpush1.bf16.msra.mxu0 0
        %315 = vmatprep.subr.bf16.mxu0 0
        %316 = vmatpush1.bf16.msra.mxu0 0
        %317 = vmatprep.mubr.bf16.mxu0 0
        %318 = vmatmul.mubr.bf16.gmra.mrb[0].mxu0 %v283
        %v319 = vpop.f32.mrb[0].mxu0
        %v320 = vadd.f32 %v262, %v319
        %v321 = vpop.f32.mrb[0].mxu0
        %v322 = vpop.f32.mrb[0].mxu0
        %v323 = vadd.f32 %v262, %v322
        %v324 = vpop.f32.mrb[0].mxu0
        %325 = vdwg.mxu0
        %v326 = vpack.c.bf16 %v323, %v320
        %v328 = vunpack.c.l.b16 %v326
        %v329 = vunpack.c.h.b16 %v326
        %v330 = vpack.c.b16 %v328, %v328
        %v331 = vpack.c.b16 %v329, %v329
        %334 = vst [vmem:[%s248] sm:$0xf] %v330
        %335 = vst [vmem:[%s248 + $0x4] sm:$0xf] %v331
        %s336 = smul.u32 2, %s22
        %p337 = scmp.lt.s32.totalorder %s21, 3
        %s338 = scalar_select %p337, %s21, 3
        %p339 = scmp.lt.s32.totalorder %s336, 1
        %s340 = scalar_select %p339, %s336, 1
        %s341 = smul.addr %s338, 2
        %s342 = sadd.s32 %s340, %s341
        %s343 = smul.addr %s342, 4
        %s344 = scalar_lea.vmem %s3, %s343
        // Predicated region
        $region37: #{pairwise_contact_head_forward.2} parent=31 // pred_check
          %p345 = pneg %p127
        $region38: #{pairwise_contact_head_forward.2} parent=31 // pred_check_branch
          %347 = sbr.rel (%p345) target = $region40
        $region39: #{pairwise_contact_head_forward.2} parent=31 // pred_region
          %s348 = smul.u32 2, %s22
        $region40: #{pairwise_contact_head_forward.2} parent=31 // pred_fallthru
          _
      $region32: #{pairwise_contact_head_forward.2} parent=5 // pred_fallthru
        _
      %p349 = scmp.le.s32.totalorder 2, %s12
      // Predicated region
      $region41: #{pairwise_contact_head_forward.2} parent=5 // pred_check
        %p350 = pneg %p349
      $region42: #{pairwise_contact_head_forward.2} parent=5 // pred_check_branch
        %352 = sbr.rel (%p350) target = $region44
      $region43: #{pairwise_contact_head_forward.2} parent=5 // pred_region
        %s353 = ssub.s32 %s12, 2
        // Predicated region
        $region45: #{pairwise_contact_head_forward.2} parent=43 // pred_check
          %p354 = pneg %p133
        $region46: #{pairwise_contact_head_forward.2} parent=43 // pred_check_branch
          %356 = sbr.rel (%p354) target = $region48
        $region47: #{pairwise_contact_head_forward.2} parent=43 // pred_region
          %s357 = smul.u32 2, %s24
          %p358 = scmp.lt.s32.totalorder %s23, 3
          %s359 = scalar_select %p358, %s23, 3
          %p360 = scmp.lt.s32.totalorder %s357, 1
          %s361 = scalar_select %p360, %s357, 1
          %s362 = smul.addr %s359, 2
          %s363 = sadd.s32 %s361, %s362
          %s364 = smul.addr %s363, 4
          %s365 = scalar_lea.vmem %s3, %s364
        $region48: #{pairwise_contact_head_forward.2} parent=43 // pred_fallthru
          _
      $region44: #{pairwise_contact_head_forward.2} parent=5 // pred_fallthru
        _
    $region6: #{pairwise_contact_head_forward.2} parent=1 // loop_footer
      %s16 = sadd.s32 1, %s12
    $region7: #{pairwise_contact_head_forward.2} parent=1 // loop_footer_branch
      %11 = sbr.rel target = $region3
    $region8: #{pairwise_contact_head_forward.2} parent=1 // loop_exit
      _
    %366 = vsyncpa [#allocation3], 1
    %s367 = scalar_lea.sflag [#allocation3], 1
    %368 = vsyncpa %s367, 1

// kernel: pairwise_contact_head_forward.3
$region0: #{pairwise_contact_head_forward.3}
  #allocation0 [shape = 'u32[]', space=smem, size = 0x4, offset = 0x4, fixed_abs, tag = 'smem constant byte address 0x4 - core index']
  #allocation1 [shape = 'u32[144,128]{1,0:T(1,128)}', space=vmem, size = 0x12000, scoped, tag = 'internal scratch']
  %s0 = inlined_call_operand.vmem [shape: bf16[4,2,8,128], index: 0, kind: input, shape index: {}]
  %s1 = inlined_call_operand.vmem [shape: f32[2,8,8], index: 1, kind: output, shape index: {0}]
  %s2 = inlined_call_operand.vmem [shape: f32[2,8,8], index: 2, kind: output, shape index: {1}]
  %3 = xla_tuple %s1, %s2
  %s4 = sld [smem:[#allocation0]]
  $region86: #{pairwise_contact_head_forward.3} parent=0
    _
  %s6 = ssub.s32 1, %s4
  %s7 = scalar_select 0, %s6, %s4
  $region1: #{pairwise_contact_head_forward.3} parent=0
    #allocation2 [shape = 'u8[16384]{0}', space=vmem, size = 0x4000, scoped, tag = 'input window, operand 0']
    loop: start=0, step=1, limit=4
    $region2: #{pairwise_contact_head_forward.3} parent=1 // loop_pre_header
      _
    $region3: #{pairwise_contact_head_forward.3} parent=1 // loop_header
      %s9 = sphi 0, %s13
      %p10 = scmp.ge.s32.totalorder %s9, 4
      %s16 = sphi 0, %s28
      %s17 = sphi 0, %s24
      %s18 = sphi 0, %s16
      %s19 = sphi 0, %s17
      %s20 = sphi 0, %s18
      %s21 = sphi 0, %s19
      %s31 = sphi 0, %s33
      %s34 = sphi 0, %s31
      %s35 = sphi 0, %s34
      %s51 = sphi 0, %s35
      %s59 = sphi 0, %s61
      %s62 = sphi 0, %s59
      %s63 = sphi 0, %s62
      %s79 = sphi 0, %s63
      %s87 = sphi 0, %s89
      %s90 = sphi 0, %s87
      %s91 = sphi 0, %s90
      %s107 = sphi 0, %s91
    $region4: #{pairwise_contact_head_forward.3} parent=1 // loop_header_branch
      %12 = sbr.rel (%p10) target = $region8
    $region5: #{pairwise_contact_head_forward.3} parent=1 // loop_body
      %s14 = ssub.s32 %s9, 1
      %s15 = ssub.s32 %s9, 2
      %s22 = sadd.s32 1, %s17
      %p23 = scmp.ge.s32.totalorder %s22, 1
      %s24 = scalar_select %p23, 0, %s22
      %s25 = sadd.s32 1, %s16
      %s26 = scalar_select %p23, %s25, %s16
      %p27 = scmp.ge.s32.totalorder %s26, 2
      %s28 = scalar_select %p27, 0, %s26
      %s29 = ssub.s32 %s16, %s28
      %p30 = scmp.eq.s32.totalorder %s29, 0
      %s32 = sadd.s32 %s31, 1
      %s33 = scalar_select %p30, %s31, %s32
      %p36 = pneg %p30
      %p37 = scmp.eq.s32.totalorder %s9, 1
      %p38 = por %p36, %p37
      %p39 = scmp.ne.s32.totalorder %s31, %s34
      %p40 = scmp.eq.s32.totalorder %s9, 0
      %p41 = por %p39, %p40
      %p42 = scmp.ne.s32.totalorder %s31, %s34
      %p43 = scmp.eq.s32.totalorder %s14, 1
      %p44 = por %p42, %p43
      %p45 = scmp.ne.s32.totalorder %s34, %s35
      %p46 = scmp.eq.s32.totalorder %s14, 0
      %p47 = por %p45, %p46
      %p48 = scmp.ne.s32.totalorder %s34, %s35
      %p49 = scmp.eq.s32.totalorder %s15, 1
      %p50 = por %p48, %p49
      %p52 = scmp.ne.s32.totalorder %s35, %s51
      %p53 = scmp.eq.s32.totalorder %s15, 0
      %p54 = por %p52, %p53
      %s55 = ssub.s32 %s16, %s28
      %s56 = ssub.s32 %s17, %s24
      %s57 = sor.u32 %s55, %s56
      %p58 = scmp.eq.s32.totalorder %s57, 0
      %s60 = sadd.s32 %s59, 1
      %s61 = scalar_select %p58, %s59, %s60
      %p64 = pneg %p58
      %p65 = scmp.eq.s32.totalorder %s9, 1
      %p66 = por %p64, %p65
      %p67 = scmp.ne.s32.totalorder %s59, %s62
      %p68 = scmp.eq.s32.totalorder %s9, 0
      %p69 = por %p67, %p68
      %p70 = scmp.ne.s32.totalorder %s59, %s62
      %p71 = scmp.eq.s32.totalorder %s14, 1
      %p72 = por %p70, %p71
      %p73 = scmp.ne.s32.totalorder %s62, %s63
      %p74 = scmp.eq.s32.totalorder %s14, 0
      %p75 = por %p73, %p74
      %p76 = scmp.ne.s32.totalorder %s62, %s63
      %p77 = scmp.eq.s32.totalorder %s15, 1
      %p78 = por %p76, %p77
      %p80 = scmp.ne.s32.totalorder %s63, %s79
      %p81 = scmp.eq.s32.totalorder %s15, 0
      %p82 = por %p80, %p81
      %s83 = ssub.s32 %s16, %s28
      %s84 = ssub.s32 %s17, %s24
      %s85 = sor.u32 %s83, %s84
      %p86 = scmp.eq.s32.totalorder %s85, 0
      %s88 = sadd.s32 %s87, 1
      %s89 = scalar_select %p86, %s87, %s88
      %p92 = pneg %p86
      %p93 = scmp.eq.s32.totalorder %s9, 1
      %p94 = por %p92, %p93
      %p95 = scmp.ne.s32.totalorder %s87, %s90
      %p96 = scmp.eq.s32.totalorder %s9, 0
      %p97 = por %p95, %p96
      %p98 = scmp.ne.s32.totalorder %s87, %s90
      %p99 = scmp.eq.s32.totalorder %s14, 1
      %p100 = por %p98, %p99
      %p101 = scmp.ne.s32.totalorder %s90, %s91
      %p102 = scmp.eq.s32.totalorder %s14, 0
      %p103 = por %p101, %p102
      %p104 = scmp.ne.s32.totalorder %s90, %s91
      %p105 = scmp.eq.s32.totalorder %s15, 1
      %p106 = por %p104, %p105
      %p108 = scmp.ne.s32.totalorder %s91, %s107
      %p109 = scmp.eq.s32.totalorder %s15, 0
      %p110 = por %p108, %p109
      %p111 = scmp.le.s32.totalorder 1, %s9
      %p112 = scmp.lt.s32.totalorder %s9, 3
      %p113 = pnand %p111, %p112
      %p114 = pneg %p113
      // Predicated region
      $region9: #{pairwise_contact_head_forward.3} parent=5 // pred_check
        _
      $region10: #{pairwise_contact_head_forward.3} parent=5 // pred_check_branch
        %116 = sbr.rel (%p113) target = $region12
      $region11: #{pairwise_contact_head_forward.3} parent=5 // pred_region
        %s117 = ssub.s32 %s9, 1
      $region12: #{pairwise_contact_head_forward.3} parent=5 // pred_fallthru
        _
      %p118 = scmp.lt.s32.totalorder %s9, 2
      // Predicated region
      $region13: #{pairwise_contact_head_forward.3} parent=5 // pred_check
        %p119 = pneg %p118
      $region14: #{pairwise_contact_head_forward.3} parent=5 // pred_check_branch
        %121 = sbr.rel (%p119) target = $region16
      $region15: #{pairwise_contact_head_forward.3} parent=5 // pred_region
        // Predicated region
        $region17: #{pairwise_contact_head_forward.3} parent=15 // pred_check
          %p122 = pneg %p41
        $region18: #{pairwise_contact_head_forward.3} parent=15 // pred_check_branch
          %124 = sbr.rel (%p122) target = $region20
        $region19: #{pairwise_contact_head_forward.3} parent=15 // pred_region
          %s125 = sand.u32 %s31, 1
          %s126 = sand.u32 %s31, 1
          %s127 = smul.addr %s126, 16
          %s128 = scalar_lea.vmem [#allocation2], %s127
          %s129 = smul.addr %s16, 4
          %s130 = scalar_lea.vmem %s0, %s129
          // Predicated region
          $region21: #{pairwise_contact_head_forward.3} parent=19 // pred_check
            _
          $region22: #{pairwise_contact_head_forward.3} parent=19 // pred_check_branch
            %132 = sbr.rel (0) target = $region24
          $region23: #{pairwise_contact_head_forward.3} parent=19 // pred_region
            // Predicated region
            $region25: #{pairwise_contact_head_forward.3} parent=23 // pred_check
              _
            $region26: #{pairwise_contact_head_forward.3} parent=23 // pred_check_branch
              %134 = sbr.rel target = $region28
            $region27: #{pairwise_contact_head_forward.3} parent=23 // pred_region
              // Predicated region
              $region40: #{pairwise_contact_head_forward.3} parent=27 // pred_check
                _
              $region41: #{pairwise_contact_head_forward.3} parent=27 // pred_check_branch
                %155 = sbr.rel (0) target = $region43
              $region42: #{pairwise_contact_head_forward.3} parent=27 // pred_region
                loop: start=0, step=1, limit=1
                $region44: #{pairwise_contact_head_forward.3} parent=42 // loop_pre_header
                  _
                $region45: #{pairwise_contact_head_forward.3} parent=42 // loop_header
                  %s157 = sphi 0, %s161
                  %p158 = scmp.ge.s32.totalorder %s157, 1
                  %s162 = sphi %s130, %s130
                  %s163 = sphi %s128, %s128
                $region46: #{pairwise_contact_head_forward.3} parent=42 // loop_header_branch
                  %160 = sbr.rel (%p158) target = $region50
                $region47: #{pairwise_contact_head_forward.3} parent=42 // loop_body
                  _
                $region48: #{pairwise_contact_head_forward.3} parent=42 // loop_footer
                  %s161 = sadd.s32 1, %s157
                $region49: #{pairwise_contact_head_forward.3} parent=42 // loop_footer_branch
                  %156 = sbr.rel target = $region45
                $region50: #{pairwise_contact_head_forward.3} parent=42 // loop_exit
                  _
                loop: start=0, step=1, limit=1
                $region51: #{pairwise_contact_head_forward.3} parent=42 // loop_pre_header
                  _
                $region52: #{pairwise_contact_head_forward.3} parent=42 // loop_header
                  %s166 = sphi 0, %s170
                  %p167 = scmp.ge.s32.totalorder %s166, 1
                  %s171 = sphi %s130, %s130
                  %s172 = sphi %s128, %s128
                $region53: #{pairwise_contact_head_forward.3} parent=42 // loop_header_branch
                  %169 = sbr.rel (%p167) target = $region57
                $region54: #{pairwise_contact_head_forward.3} parent=42 // loop_body
                  %v173 = vld [vmem:[%s171] sm:$0xf]
                  %174 = vst [vmem:[%s172] sm:$0xf] %v173
                  %v175 = vld [vmem:[%s171 + $0x8] sm:$0xf]
                  %176 = vst [vmem:[%s172 + $0x4] sm:$0xf] %v175
                  %v177 = vld [vmem:[%s171 + $0x10] sm:$0xf]
                  %178 = vst [vmem:[%s172 + $0x8] sm:$0xf] %v177
                  %v179 = vld [vmem:[%s171 + $0x18] sm:$0xf]
                  %180 = vst [vmem:[%s172 + $0xc] sm:$0xf] %v179
                $region55: #{pairwise_contact_head_forward.3} parent=42 // loop_footer
                  %s170 = sadd.s32 1, %s166
                $region56: #{pairwise_contact_head_forward.3} parent=42 // loop_footer_branch
                  %165 = sbr.rel target = $region52
                $region57: #{pairwise_contact_head_forward.3} parent=42 // loop_exit
                  _
              $region43: #{pairwise_contact_head_forward.3} parent=27 // pred_fallthru
                _
            $region28: #{pairwise_contact_head_forward.3} parent=23 // pred_fallthru
              _
            // Predicated region
            $region29: #{pairwise_contact_head_forward.3} parent=23 // pred_check
              _
            $region30: #{pairwise_contact_head_forward.3} parent=23 // pred_check_branch
              %136 = sbr.rel (0) target = $region32
            $region31: #{pairwise_contact_head_forward.3} parent=23 // pred_region
              loop: start=0, step=1, limit=1
              $region33: #{pairwise_contact_head_forward.3} parent=31 // loop_pre_header
                _
              $region34: #{pairwise_contact_head_forward.3} parent=31 // loop_header
                %s139 = sphi 0, %s143
                %p140 = scmp.ge.s32.totalorder %s139, 1
                %s144 = sphi %s130, %s130
                %s145 = sphi %s128, %s128
              $region35: #{pairwise_contact_head_forward.3} parent=31 // loop_header_branch
                %142 = sbr.rel (%p140) target = $region39
              $region36: #{pairwise_contact_head_forward.3} parent=31 // loop_body
                %v146 = vld [vmem:[%s144] sm:$0xf]
                %147 = vst [vmem:[%s145] sm:$0xf] %v146
                %v148 = vld [vmem:[%s144 + $0x8] sm:$0xf]
                %149 = vst [vmem:[%s145 + $0x4] sm:$0xf] %v148
                %v150 = vld [vmem:[%s144 + $0x10] sm:$0xf]
                %151 = vst [vmem:[%s145 + $0x8] sm:$0xf] %v150
                %v152 = vld [vmem:[%s144 + $0x18] sm:$0xf]
                %153 = vst [vmem:[%s145 + $0xc] sm:$0xf] %v152
              $region37: #{pairwise_contact_head_forward.3} parent=31 // loop_footer
                %s143 = sadd.s32 1, %s139
              $region38: #{pairwise_contact_head_forward.3} parent=31 // loop_footer_branch
                %138 = sbr.rel target = $region34
              $region39: #{pairwise_contact_head_forward.3} parent=31 // loop_exit
                _
            $region32: #{pairwise_contact_head_forward.3} parent=23 // pred_fallthru
              _
          $region24: #{pairwise_contact_head_forward.3} parent=19 // pred_fallthru
            _
          %181 = vnop
        $region20: #{pairwise_contact_head_forward.3} parent=15 // pred_fallthru
          _
      $region16: #{pairwise_contact_head_forward.3} parent=5 // pred_fallthru
        _
      %p182 = scmp.le.s32.totalorder 1, %s9
      %p183 = scmp.lt.s32.totalorder %s9, 3
      %p184 = pnand %p182, %p183
      %p185 = pneg %p184
      // Predicated region
      $region58: #{pairwise_contact_head_forward.3} parent=5 // pred_check
        _
      $region59: #{pairwise_contact_head_forward.3} parent=5 // pred_check_branch
        %187 = sbr.rel (%p184) target = $region61
      $region60: #{pairwise_contact_head_forward.3} parent=5 // pred_region
        %s188 = ssub.s32 %s9, 1
        %s189 = sand.u32 %s34, 1
        %s190 = sand.u32 %s34, 1
        %s191 = smul.addr %s190, 16
        %s192 = scalar_lea.vmem [#allocation2], %s191
        // Predicated region
        $region62: #{pairwise_contact_head_forward.3} parent=60 // pred_check
          %p193 = pneg %p47
        $region63: #{pairwise_contact_head_forward.3} parent=60 // pred_check_branch
          %195 = sbr.rel (%p193) target = $region65
        $region64: #{pairwise_contact_head_forward.3} parent=60 // pred_region
          _
        $region65: #{pairwise_contact_head_forward.3} parent=60 // pred_fallthru
          _
        %s196 = sand.u32 %s34, 1
        %s197 = sand.u32 %s34, 1
        %s198 = smul.addr %s197, 16
        %s199 = scalar_lea.vmem [#allocation2], %s198
        %p200 = pneg %p47
        %p201 = pneg %p44
        %p202 = pneg %p75
        %p203 = pneg %p72
        %p204 = scmp.lt.s32.totalorder %s18, 1
        %s205 = scalar_select %p204, %s18, 1
        %p206 = scmp.lt.s32.totalorder %s19, 0
        %s207 = scalar_select %p206, %s19, 0
        %s208 = sadd.s32 %s207, %s205
        %s209 = smul.addr %s208, 8
        %s210 = scalar_lea.vmem %s1, %s209
        %p211 = pneg %p103
        %p212 = pneg %p100
        %p213 = scmp.lt.s32.totalorder %s18, 1
        %s214 = scalar_select %p213, %s18, 1
        %p215 = scmp.lt.s32.totalorder %s19, 0
        %s216 = scalar_select %p215, %s19, 0
        %s217 = sadd.s32 %s216, %s214
        %s218 = smul.addr %s217, 8
        %s219 = scalar_lea.vmem %s2, %s218
        %p220 = scmp.lt.s32.totalorder %s18, 1
        %s221 = scalar_select %p220, %s18, 1
        %p222 = scmp.lt.s32.totalorder %s19, 0
        %s223 = scalar_select %p222, %s19, 0
        %s224 = sadd.s32 %s223, %s221
        %s225 = smul.addr %s224, 8
        %s226 = scalar_lea.vmem %s1, %s225
        %p227 = scmp.lt.s32.totalorder %s18, 1
        %s228 = scalar_select %p227, %s18, 1
        %p229 = scmp.lt.s32.totalorder %s19, 0
        %s230 = scalar_select %p229, %s19, 0
        %s231 = sadd.s32 %s230, %s228
        %s232 = smul.addr %s231, 8
        %s233 = scalar_lea.vmem %s2, %s232
        %s235 = smul.u32 %s19, 8
        %v236 = vld [vmem:[%s192] sm:$0xf]
        %s237 = scalar_lea.vmem %s192, 4 [#allocation2]
        %v238 = vld [vmem:[%s237] sm:$0xf]
        %s239 = scalar_lea.vmem %s192, 8 [#allocation2]
        %v240 = vld [vmem:[%s239] sm:$0xf]
        %s241 = scalar_lea.vmem %s192, 12 [#allocation2]
        %v242 = vld [vmem:[%s241] sm:$0xf]
        %s243 = sshra.s32 %s235, 3
        %s244 = sand.u32 %s235, 7
        %s245 = smul.addr %s243, 4
        %s246 = scalar_lea.vmem %s192, %s245 [#allocation2]
        %v247 = vld [vmem:[%s246] sm:$0xf]
        %s248 = sadd.s32 %s243, 1
        %s249 = smul.addr %s248, 4
        %s250 = scalar_lea.vmem %s192, %s249 [#allocation2]
        %v251 = vld [vmem:[%s250] sm:$0xf]
        %s252 = sadd.s32 %s243, 2
        %s253 = smul.addr %s252, 4
        %s254 = scalar_lea.vmem %s192, %s253 [#allocation2]
        %v255 = vld [vmem:[%s254] sm:$0xf]
        %s256 = sadd.s32 %s243, 3
        %s257 = smul.addr %s256, 4
        %s258 = scalar_lea.vmem %s192, %s257 [#allocation2]
        %v259 = vld [vmem:[%s258] sm:$0xf]
        %260 = vmatprep.subr.bf16.mxu0 0
        %261 = vmatpush1.bf16.xpose.msra.mxu0 %v236
        %262 = vmatprep.subr.bf16.mxu0 0
        %263 = vmatpush1.bf16.xpose.msra.mxu0 0
        %264 = vmatprep.subr.bf16.mxu0 0
        %265 = vmatpush1.bf16.xpose.msra.mxu0 0
        %266 = vmatprep.subr.bf16.mxu0 0
        %267 = vmatpush1.bf16.xpose.msra.mxu0 0
        %268 = vmatprep.subr.bf16.mxu0 0
        %269 = vmatpush1.bf16.xpose.msra.mxu0 0
        %270 = vmatprep.subr.bf16.mxu0 0
        %271 = vmatpush1.bf16.xpose.msra.mxu0 0
        %272 = vmatprep.subr.bf16.mxu0 0
        %273 = vmatpush1.bf16.xpose.msra.mxu0 0
        %274 = vmatprep.subr.bf16.mxu0 0
        %275 = vmatpush1.bf16.xpose.msra.mxu0 0
        %276 = vmatprep.subr.bf16.mxu0 0
        %277 = vmatpush1.bf16.xpose.msra.mxu0 0
        %278 = vmatprep.subr.bf16.mxu0 0
        %279 = vmatpush1.bf16.xpose.msra.mxu0 0
        %280 = vmatprep.subr.bf16.mxu0 0
        %281 = vmatpush1.bf16.xpose.msra.mxu0 0
        %282 = vmatprep.subr.bf16.mxu0 0
        %283 = vmatpush1.bf16.xpose.msra.mxu0 0
        %284 = vmatprep.subr.bf16.mxu0 0
        %285 = vmatpush1.bf16.xpose.msra.mxu0 0
        %286 = vmatprep.subr.bf16.mxu0 0
        %287 = vmatpush1.bf16.xpose.msra.mxu0 0
        %288 = vmatprep.subr.bf16.mxu0 0
        %289 = vmatpush1.bf16.xpose.msra.mxu0 0
        %290 = vmatprep.subr.bf16.mxu0 0
        %291 = vmatpush1.bf16.xpose.msra.mxu0 0
        %292 = vmatprep.mubr.bf16.mxu0 0
        %293 = vmatmul.mubr.bf16.gmra.mrb[0].mxu0 %v251
        %v294 = vpop.f32.mrb[0].mxu0
        %v295 = vadd.f32 0.0, %v294
        %v296 = vpop.f32.mrb[0].mxu0
        %v297 = vpop.f32.mrb[0].mxu0
        %v298 = vpop.f32.mrb[0].mxu0
        %299 = vdwg.mxu0
        %300 = vmatprep.subr.bf16.mxu0 0
        %301 = vmatpush1.bf16.xpose.msra.mxu0 %v238
        %302 = vmatprep.subr.bf16.mxu0 0
        %303 = vmatpush1.bf16.xpose.msra.mxu0 0
        %304 = vmatprep.subr.bf16.mxu0 0
        %305 = vmatpush1.bf16.xpose.msra.mxu0 0
        %306 = vmatprep.subr.bf16.mxu0 0
        %307 = vmatpush1.bf16.xpose.msra.mxu0 0
        %308 = vmatprep.subr.bf16.mxu0 0
        %309 = vmatpush1.bf16.xpose.msra.mxu0 0
        %310 = vmatprep.subr.bf16.mxu0 0
        %311 = vmatpush1.bf16.xpose.msra.mxu0 0
        %312 = vmatprep.subr.bf16.mxu0 0
        %313 = vmatpush1.bf16.xpose.msra.mxu0 0
        %314 = vmatprep.subr.bf16.mxu0 0
        %315 = vmatpush1.bf16.xpose.msra.mxu0 0
        %316 = vmatprep.subr.bf16.mxu0 0
        %317 = vmatpush1.bf16.xpose.msra.mxu0 0
        %318 = vmatprep.subr.bf16.mxu0 0
        %319 = vmatpush1.bf16.xpose.msra.mxu0 0
        %320 = vmatprep.subr.bf16.mxu0 0
        %321 = vmatpush1.bf16.xpose.msra.mxu0 0
        %322 = vmatprep.subr.bf16.mxu0 0
        %323 = vmatpush1.bf16.xpose.msra.mxu0 0
        %324 = vmatprep.subr.bf16.mxu0 0
        %325 = vmatpush1.bf16.xpose.msra.mxu0 0
        %326 = vmatprep.subr.bf16.mxu0 0
        %327 = vmatpush1.bf16.xpose.msra.mxu0 0
        %328 = vmatprep.subr.bf16.mxu0 0
        %329 = vmatpush1.bf16.xpose.msra.mxu0 0
        %330 = vmatprep.subr.bf16.mxu0 0
        %331 = vmatpush1.bf16.xpose.msra.mxu0 0
        %332 = vmatprep.mubr.bf16.mxu0 0
        %333 = vmatmul.mubr.bf16.gmra.mrb[0].mxu0 %v247
        %v334 = vpop.f32.mrb[0].mxu0
        %v335 = vadd.f32 %v295, %v334
        %v336 = vpop.f32.mrb[0].mxu0
        %v337 = vpop.f32.mrb[0].mxu0
        %v338 = vpop.f32.mrb[0].mxu0
        %339 = vdwg.mxu0
        %v340 = vmul.f32 %v335, 0.5
        %vm341 = vcmask 64512
        %342 = vst.msk [vmem:[%s226] sm:$0xff] %vm341, %v340
        %343 = vmatprep.subr.bf16.mxu0 0
        %344 = vmatpush1.bf16.xpose.msra.mxu0 %v240
        %345 = vmatprep.subr.bf16.mxu0 0
        %346 = vmatpush1.bf16.xpose.msra.mxu0 0
        %347 = vmatprep.subr.bf16.mxu0 0
        %348 = vmatpush1.bf16.xpose.msra.mxu0 0
        %349 = vmatprep.subr.bf16.mxu0 0
        %350 = vmatpush1.bf16.xpose.msra.mxu0 0
        %351 = vmatprep.subr.bf16.mxu0 0
        %352 = vmatpush1.bf16.xpose.msra.mxu0 0
        %353 = vmatprep.subr.bf16.mxu0 0
        %354 = vmatpush1.bf16.xpose.msra.mxu0 0
        %355 = vmatprep.subr.bf16.mxu0 0
        %356 = vmatpush1.bf16.xpose.msra.mxu0 0
        %357 = vmatprep.subr.bf16.mxu0 0
        %358 = vmatpush1.bf16.xpose.msra.mxu0 0
        %359 = vmatprep.subr.bf16.mxu0 0
        %360 = vmatpush1.bf16.xpose.msra.mxu0 0
        %361 = vmatprep.subr.bf16.mxu0 0
        %362 = vmatpush1.bf16.xpose.msra.mxu0 0
        %363 = vmatprep.subr.bf16.mxu0 0
        %364 = vmatpush1.bf16.xpose.msra.mxu0 0
        %365 = vmatprep.subr.bf16.mxu0 0
        %366 = vmatpush1.bf16.xpose.msra.mxu0 0
        %367 = vmatprep.subr.bf16.mxu0 0
        %368 = vmatpush1.bf16.xpose.msra.mxu0 0
        %369 = vmatprep.subr.bf16.mxu0 0
        %370 = vmatpush1.bf16.xpose.msra.mxu0 0
        %371 = vmatprep.subr.bf16.mxu0 0
        %372 = vmatpush1.bf16.xpose.msra.mxu0 0
        %373 = vmatprep.subr.bf16.mxu0 0
        %374 = vmatpush1.bf16.xpose.msra.mxu0 0
        %375 = vmatprep.mubr.bf16.mxu0 0
        %376 = vmatmul.mubr.bf16.gmra.mrb[0].mxu0 %v259
        %v377 = vpop.f32.mrb[0].mxu0
        %v378 = vadd.f32 0.0, %v377
        %v379 = vpop.f32.mrb[0].mxu0
        %v380 = vpop.f32.mrb[0].mxu0
        %v381 = vpop.f32.mrb[0].mxu0
        %382 = vdwg.mxu0
        %383 = vmatprep.subr.bf16.mxu0 0
        %384 = vmatpush1.bf16.xpose.msra.mxu0 %v242
        %385 = vmatprep.subr.bf16.mxu0 0
        %386 = vmatpush1.bf16.xpose.msra.mxu0 0
        %387 = vmatprep.subr.bf16.mxu0 0
        %388 = vmatpush1.bf16.xpose.msra.mxu0 0
        %389 = vmatprep.subr.bf16.mxu0 0
        %390 = vmatpush1.bf16.xpose.msra.mxu0 0
        %391 = vmatprep.subr.bf16.mxu0 0
        %392 = vmatpush1.bf16.xpose.msra.mxu0 0
        %393 = vmatprep.subr.bf16.mxu0 0
        %394 = vmatpush1.bf16.xpose.msra.mxu0 0
        %395 = vmatprep.subr.bf16.mxu0 0
        %396 = vmatpush1.bf16.xpose.msra.mxu0 0
        %397 = vmatprep.subr.bf16.mxu0 0
        %398 = vmatpush1.bf16.xpose.msra.mxu0 0
        %399 = vmatprep.subr.bf16.mxu0 0
        %400 = vmatpush1.bf16.xpose.msra.mxu0 0
        %401 = vmatprep.subr.bf16.mxu0 0
        %402 = vmatpush1.bf16.xpose.msra.mxu0 0
        %403 = vmatprep.subr.bf16.mxu0 0
        %404 = vmatpush1.bf16.xpose.msra.mxu0 0
        %405 = vmatprep.subr.bf16.mxu0 0
        %406 = vmatpush1.bf16.xpose.msra.mxu0 0
        %407 = vmatprep.subr.bf16.mxu0 0
        %408 = vmatpush1.bf16.xpose.msra.mxu0 0
        %409 = vmatprep.subr.bf16.mxu0 0
        %410 = vmatpush1.bf16.xpose.msra.mxu0 0
        %411 = vmatprep.subr.bf16.mxu0 0
        %412 = vmatpush1.bf16.xpose.msra.mxu0 0
        %413 = vmatprep.subr.bf16.mxu0 0
        %414 = vmatpush1.bf16.xpose.msra.mxu0 0
        %415 = vmatprep.mubr.bf16.mxu0 0
        %416 = vmatmul.mubr.bf16.gmra.mrb[0].mxu0 %v255
        %v417 = vpop.f32.mrb[0].mxu0
        %v418 = vadd.f32 %v378, %v417
        %v419 = vpop.f32.mrb[0].mxu0
        %v420 = vpop.f32.mrb[0].mxu0
        %v421 = vpop.f32.mrb[0].mxu0
        %422 = vdwg.mxu0
        %v423 = vmul.f32 %v418, 0.5
        %424 = vst.msk [vmem:[%s233] sm:$0xff] %vm341, %v423
        %p425 = scmp.lt.s32.totalorder %s18, 1
        %s426 = scalar_select %p425, %s18, 1
        %p427 = scmp.lt.s32.totalorder %s19, 0
        %s428 = scalar_select %p427, %s19, 0
        %s429 = sadd.s32 %s428, %s426
        %s430 = smul.addr %s429, 8
        %s431 = scalar_lea.vmem %s1, %s430
        %p432 = scmp.lt.s32.totalorder %s18, 1
        %s433 = scalar_select %p432, %s18, 1
        %p434 = scmp.lt.s32.totalorder %s19, 0
        %s435 = scalar_select %p434, %s19, 0
        %s436 = sadd.s32 %s435, %s433
        %s437 = smul.addr %s436, 8
        %s438 = scalar_lea.vmem %s2, %s437
        // Predicated region
        $region66: #{pairwise_contact_head_forward.3} parent=60 // pred_check
          %p439 = pneg %p72
        $region67: #{pairwise_contact_head_forward.3} parent=60 // pred_check_branch
          %441 = sbr.rel (%p439) target = $region69
        $region68: #{pairwise_contact_head_forward.3} parent=60 // pred_region
          _
        $region69: #{pairwise_contact_head_forward.3} parent=60 // pred_fallthru
          _
        // Predicated region
        $region70: #{pairwise_contact_head_forward.3} parent=60 // pred_check
          %p442 = pneg %p100
        $region71: #{pairwise_contact_head_forward.3} parent=60 // pred_check_branch
          %444 = sbr.rel (%p442) target = $region73
        $region72: #{pairwise_contact_head_forward.3} parent=60 // pred_region
          _
        $region73: #{pairwise_contact_head_forward.3} parent=60 // pred_fallthru
          _
      $region61: #{pairwise_contact_head_forward.3} parent=5 // pred_fallthru
        _
      %p445 = scmp.le.s32.totalorder 2, %s9
      // Predicated region
      $region74: #{pairwise_contact_head_forward.3} parent=5 // pred_check
        %p446 = pneg %p445
      $region75: #{pairwise_contact_head_forward.3} parent=5 // pred_check_branch
        %448 = sbr.rel (%p446) target = $region77
      $region76: #{pairwise_contact_head_forward.3} parent=5 // pred_region
        %s449 = ssub.s32 %s9, 2
        // Predicated region
        $region78: #{pairwise_contact_head_forward.3} parent=76 // pred_check
          %p450 = pneg %p78
        $region79: #{pairwise_contact_head_forward.3} parent=76 // pred_check_branch
          %452 = sbr.rel (%p450) target = $region81
        $region80: #{pairwise_contact_head_forward.3} parent=76 // pred_region
          %p453 = scmp.lt.s32.totalorder %s20, 1
          %s454 = scalar_select %p453, %s20, 1
          %p455 = scmp.lt.s32.totalorder %s21, 0
          %s456 = scalar_select %p455, %s21, 0
          %s457 = sadd.s32 %s456, %s454
          %s458 = smul.addr %s457, 8
          %s459 = scalar_lea.vmem %s1, %s458
        $region81: #{pairwise_contact_head_forward.3} parent=76 // pred_fallthru
          _
        // Predicated region
        $region82: #{pairwise_contact_head_forward.3} parent=76 // pred_check
          %p460 = pneg %p106
        $region83: #{pairwise_contact_head_forward.3} parent=76 // pred_check_branch
          %462 = sbr.rel (%p460) target = $region85
        $region84: #{pairwise_contact_head_forward.3} parent=76 // pred_region
          %p463 = scmp.lt.s32.totalorder %s20, 1
          %s464 = scalar_select %p463, %s20, 1
          %p465 = scmp.lt.s32.totalorder %s21, 0
          %s466 = scalar_select %p465, %s21, 0
          %s467 = sadd.s32 %s466, %s464
          %s468 = smul.addr %s467, 8
          %s469 = scalar_lea.vmem %s2, %s468
        $region85: #{pairwise_contact_head_forward.3} parent=76 // pred_fallthru
          _
      $region77: #{pairwise_contact_head_forward.3} parent=5 // pred_fallthru
        _
    $region6: #{pairwise_contact_head_forward.3} parent=1 // loop_footer
      %s13 = sadd.s32 1, %s9
    $region7: #{pairwise_contact_head_forward.3} parent=1 // loop_footer_branch
      %8 = sbr.rel target = $region3
    $region8: #{pairwise_contact_head_forward.3} parent=1 // loop_exit
      _

</llo_original>
